<compile_context>
chip_gen: v5e
topology: v5e:2x2
jax: 0.10.0
libtpu: 0.0.40
codegen_flags: <defaults>
</compile_context>

<pallas_src>
import functools

import jax
import jax.numpy as jnp
from jax.experimental import pallas as pl
from jax.experimental.pallas import tpu as pltpu


# ---------------------------------------------------------------------------
# Hardware-aware sizing helpers
# ---------------------------------------------------------------------------

def _tpu_generation():
    try:
        kind = jax.devices()[0].device_kind.lower()
    except Exception:
        return 6
    for g in (7, 6, 5, 4):
        if f"v{g}" in kind:
            return g
    return 6


def _budgets():
    """(per-stream tile byte target, scoped-VMEM limit) per TPU generation."""
    gen = _tpu_generation()
    if gen >= 7:
        # v7x: 3.2 TB/s HBM -> need >=4 MiB tiles to amortize ~0.35us/step
        # overhead; physical VMEM is 64 MiB/TC, keep the scoped limit under it.
        return 4 << 20, 48 << 20
    if gen == 6:
        return 4 << 20, 64 << 20
    # v5e (and older): ~0.8 TB/s HBM, 2 MiB tiles already sit near roofline.
    return 2 << 20, 32 << 20


def _sublane_multiple(dtype):
    # Native packing: 32-bit -> 8 sublanes, 16-bit -> 16, 8-bit -> 32.
    return max(8, 256 // (jnp.dtype(dtype).itemsize * 8))


def _round_to_divisor(tc, C, sub):
    """Prefer a channel tile that divides C evenly (no ragged/masked block)."""
    if tc >= C:
        return C
    if C % tc == 0:
        return tc
    t = tc
    while t >= sub:
        if C % t == 0:
            return t
        t -= sub
    return tc


# ---------------------------------------------------------------------------
# Kernels
# ---------------------------------------------------------------------------

def _mixstyle_slab_kernel(x_ref, onehot_ref, lam_ref, o_ref, *, eps):
    # x_ref      : (B, tc, L) full-batch channel slab (the ONLY big stream in)
    # onehot_ref : (B, B) f32, row b = one-hot of perm[b]
    # lam_ref    : (B, 1) f32 per-batch Beta(alpha, alpha) interpolation
    L = x_ref.shape[-1]
    inv_ddof = 1.0 / max(L - 1, 1)            # unbiased variance (guard L == 1)

    xf = x_ref[...].astype(jnp.float32)        # (B, tc, L)

    mu = jnp.mean(xf, axis=-1)                                     # (B, tc)
    var = jnp.sum((xf - mu[:, :, None]) ** 2, axis=-1) * inv_ddof  # (B, tc)
    sigma = jnp.sqrt(var + eps)                                    # (B, tc)

    # Permuted-batch statistics via one-hot row selection (exact at default
    # precision; no second HBM read of x needed).
    onehot = onehot_ref[...]
    mu_p = jnp.dot(onehot, mu, preferred_element_type=jnp.float32)
    sigma_p = jnp.dot(onehot, sigma, preferred_element_type=jnp.float32)

    lam = lam_ref[...]                         # (B, 1)
    mu_mix = lam * mu + (1.0 - lam) * mu_p
    sigma_mix = lam * sigma + (1.0 - lam) * sigma_p

    # Fused per-channel affine: (x - mu)/sigma * sigma_mix + mu_mix == x*a + s
    # (divisions only touch B*tc elements, not B*tc*L).  Apply in f32 always
    # (v5e has no bf16 VALU; also avoids bf16 drift), cast only at the store.
    a = sigma_mix / sigma                      # (B, tc)
    shift = mu_mix - mu * a                    # (B, tc)
    o_ref[...] = (xf * a[:, :, None] + shift[:, :, None]).astype(o_ref.dtype)


def _mixstyle_gather_kernel(perm_ref, x_ref, xp_ref, lam_ref, o_ref, *, eps):
    # Fallback for huge B*L.  perm_ref is scalar-prefetch int32[B] consumed by
    # the index_maps only; xp_ref is the (1, tc, L) tile of x[perm[b]].
    del perm_ref
    b = pl.program_id(0)
    L = x_ref.shape[-1]
    inv_ddof = 1.0 / max(L - 1, 1)

    xf = x_ref[...].astype(jnp.float32)
    xpf = xp_ref[...].astype(jnp.float32)

    mu = jnp.mean(xf, axis=-1, keepdims=True)
    var = jnp.sum((xf - mu) ** 2, axis=-1, keepdims=True) * inv_ddof
    sigma = jnp.sqrt(var + eps)

    mu_p = jnp.mean(xpf, axis=-1, keepdims=True)
    var_p = jnp.sum((xpf - mu_p) ** 2, axis=-1, keepdims=True) * inv_ddof
    sigma_p = jnp.sqrt(var_p + eps)

    lam = lam_ref[b]
    mu_mix = lam * mu + (1.0 - lam) * mu_p
    sigma_mix = lam * sigma + (1.0 - lam) * sigma_p

    a = sigma_mix / sigma                      # (1, tc, 1)
    shift = mu_mix - mu * a
    o_ref[...] = (xf * a + shift).astype(o_ref.dtype)


# ---------------------------------------------------------------------------
# Wrappers
# ---------------------------------------------------------------------------

def _mixstyle_apply_slab(x, lam, perm, *, eps=1e-6, channel_block=None):
    """Primary path: one read + one write of x, permuted stats via one-hot."""
    B, C, L = x.shape
    target, vmem_limit = _budgets()
    sub = _sublane_multiple(x.dtype)
    itemsize = jnp.dtype(x.dtype).itemsize
    bytes_per_c = max(B * L * itemsize, 1)

    if channel_block is None:
        if C * bytes_per_c <= target:
            tc = C
        else:
            tc = max(sub, (target // bytes_per_c) // sub * sub)
            tc = min(tc, C)
            tc = _round_to_divisor(tc, C, sub)
        # v7x has 2 TensorCores: give them >=2 balanced grid steps when the
        # tensor is large enough for the extra step overhead to be worth it.
        if (_tpu_generation() >= 7 and tc == C and C % (2 * sub) == 0
                and C * bytes_per_c > (1 << 20)):
            tc = C // 2
    else:
        tc = channel_block
    n_cblocks = pl.cdiv(C, tc)

    onehot = jax.nn.one_hot(perm, B, dtype=jnp.float32)         # (B, B)
    lam2 = lam.astype(jnp.float32).reshape(B, 1)

    grid_spec = pltpu.PrefetchScalarGridSpec(
        num_scalar_prefetch=0,
        grid=(n_cblocks,),
        in_specs=[
            pl.BlockSpec((B, tc, L), lambda c: (0, c, 0)),      # x slab
            pl.BlockSpec((B, B), lambda c: (0, 0)),             # one-hot(perm)
            pl.BlockSpec((B, 1), lambda c: (0, 0)),             # lam
        ],
        out_specs=pl.BlockSpec((B, tc, L), lambda c: (0, c, 0)),
    )
    kernel = functools.partial(_mixstyle_slab_kernel, eps=eps)
    return pl.pallas_call(
        kernel,
        out_shape=jax.ShapeDtypeStruct((B, C, L), x.dtype),
        grid_spec=grid_spec,
        compiler_params=pltpu.CompilerParams(
            dimension_semantics=("parallel",),
            vmem_limit_bytes=vmem_limit),
    )(x, onehot, lam2)


def _mixstyle_apply_gather(x, lam, perm, *, eps=1e-6, channel_block=None):
    """Fallback for huge B*L: grid=(B, C/tc), x[perm[b]] via scalar prefetch."""
    B, C, L = x.shape
    target, vmem_limit = _budgets()
    sub = _sublane_multiple(x.dtype)
    itemsize = jnp.dtype(x.dtype).itemsize

    if channel_block is None:
        tc = max(sub, (target // max(L * itemsize, 1)) // sub * sub)
        tc = min(tc, C)
        tc = _round_to_divisor(tc, C, sub)
    else:
        tc = channel_block
    n_cblocks = pl.cdiv(C, tc)

    grid_spec = pltpu.PrefetchScalarGridSpec(
        num_scalar_prefetch=1,                 # perm drives the gather index_map
        grid=(B, n_cblocks),
        in_specs=[
            pl.BlockSpec((1, tc, L), lambda b, c, perm: (b, c, 0)),        # x[b]
            pl.BlockSpec((1, tc, L), lambda b, c, perm: (perm[b], c, 0)),  # x[perm[b]]
            pl.BlockSpec(memory_space=pltpu.MemorySpace.SMEM),             # lam
        ],
        out_specs=pl.BlockSpec((1, tc, L), lambda b, c, perm: (b, c, 0)),
    )
    kernel = functools.partial(_mixstyle_gather_kernel, eps=eps)
    return pl.pallas_call(
        kernel,
        out_shape=jax.ShapeDtypeStruct((B, C, L), x.dtype),
        grid_spec=grid_spec,
        compiler_params=pltpu.CompilerParams(
            dimension_semantics=("parallel", "parallel"),
            vmem_limit_bytes=vmem_limit),
    )(perm.astype(jnp.int32), x, x, lam.astype(jnp.float32))


def mixstyle_apply(x, lam, perm, *, eps=1e-6):
    """Core MixStyle transform (assumes the stochastic 'apply' branch taken)."""
    B, C, L = x.shape
    target, _ = _budgets()
    sub = _sublane_multiple(x.dtype)
    itemsize = jnp.dtype(x.dtype).itemsize
    # Slab path whenever a minimal full-batch channel slab fits the budget;
    # it halves HBM reads vs. the gather layout and is pipelined.
    if B * sub * L * itemsize <= target:
        return _mixstyle_apply_slab(x, lam, perm, eps=eps)
    return _mixstyle_apply_gather(x, lam, perm, eps=eps)


# ---------------------------------------------------------------------------
# Randoms + full module forward
# ---------------------------------------------------------------------------

def make_mixstyle_randoms(key, batch_size, alpha=0.1):
    """Beta(alpha, alpha) interpolation + half-shuffled reversed permutation."""
    k_beta, k_pb, k_pa = jax.random.split(key, 3)
    lam = jax.random.beta(k_beta, alpha, alpha, shape=(batch_size,)).astype(jnp.float32)
    perm = jnp.arange(batch_size - 1, -1, -1)
    n_b = (batch_size + 1) // 2              # torch.chunk(2): first chunk is ceil(B/2)
    perm_b = perm[:n_b][jax.random.permutation(k_pb, n_b)]
    perm_a = perm[n_b:][jax.random.permutation(k_pa, batch_size - n_b)]
    perm = jnp.concatenate([perm_b, perm_a], axis=0).astype(jnp.int32)
    return lam, perm


def mixstyle_forward(x, key, *, p=0.5, alpha=0.1, eps=1e-6, training=True):
    """Full module semantics. The probability-p gate is a device-side lax.cond
    (no host sync / jit-safe), matching `random.random() > p -> identity`."""
    if not training:
        return x
    k_apply, k_rand = jax.random.split(key)
    lam, perm = make_mixstyle_randoms(k_rand, x.shape[0], alpha)
    apply_mix = jax.random.uniform(k_apply) <= p
    return jax.lax.cond(
        apply_mix,
        lambda xx: mixstyle_apply(xx, lam, perm, eps=eps),
        lambda xx: xx,
        x,
    )


# ---------------------------------------------------------------------------
# Reference + self-test
# ---------------------------------------------------------------------------

def _reference(x, lam, perm, eps=1e-6):
    mu = x.mean(axis=-1, keepdims=True)
    var = x.var(axis=-1, ddof=1, keepdims=True)
    sigma = jnp.sqrt(var + eps)
    x_normed = (x - mu) / sigma
    lam_b = lam.reshape(-1, 1, 1)
    mu_mix = mu * lam_b + mu[perm] * (1.0 - lam_b)
    sigma_mix = sigma * lam_b + sigma[perm] * (1.0 - lam_b)
    return x_normed * sigma_mix + mu_mix


if __name__ == "__main__":
    key = jax.random.PRNGKey(0)
    k_x, k_rand, k_xb, k_rb = jax.random.split(key, 4)

    # --- f32, slab path (dispatcher picks it for this size) ---------------
    B, C, L = 4, 8, 128
    x = jax.random.normal(k_x, (B, C, L), dtype=jnp.float32)
    lam, perm = make_mixstyle_randoms(k_rand, B, alpha=0.1)
    ref = _reference(x, lam, perm, eps=1e-6)

    out_slab = jax.block_until_ready(mixstyle_apply(x, lam, perm, eps=1e-6))
    assert out_slab.shape == x.shape and out_slab.dtype == x.dtype
    assert jnp.allclose(out_slab, ref, atol=1e-4, rtol=1e-4), "slab-path mismatch"

    # --- f32, gather fallback (what enormous B*L would take) --------------
    out_gather = jax.block_until_ready(_mixstyle_apply_gather(x, lam, perm, eps=1e-6))
    assert out_gather.shape == x.shape and out_gather.dtype == x.dtype
    assert jnp.allclose(out_gather, ref, atol=1e-4, rtol=1e-4), "gather-path mismatch"

    # --- bf16 slab path (stats + affine in f32, cast only at the store) ---
    Bb, Cb, Lb = 4, 32, 256
    xb = jax.random.normal(k_xb, (Bb, Cb, Lb), dtype=jnp.float32).astype(jnp.bfloat16)
    lam_b, perm_b = make_mixstyle_randoms(k_rb, Bb, alpha=0.1)
    ref_b = _reference(xb.astype(jnp.float32), lam_b, perm_b, eps=1e-6)
    out_b = jax.block_until_ready(mixstyle_apply(xb, lam_b, perm_b, eps=1e-6))
    assert out_b.shape == xb.shape and out_b.dtype == xb.dtype
    assert jnp.allclose(out_b.astype(jnp.float32), ref_b, atol=7.5e-2, rtol=7.5e-2), \
        "bf16 slab-path mismatch"

    # --- full forward with the device-side p-gate (p=1.0 so mixing runs) --
    out2 = jax.block_until_ready(
        mixstyle_forward(x, jax.random.PRNGKey(1), p=1.0, alpha=0.1, training=True))
    assert out2.shape == x.shape

    print("KERNEL_OK")
</pallas_src>

<mosaic_0001>
module attributes {stable_mosaic.version = 11 : i64} {
  func.func @_mixstyle_slab_kernel(%arg0: i32, %arg1: memref<4x8x128xf32, #tpu.memory_space<vmem>>, %arg2: memref<4x4xf32, #tpu.memory_space<vmem>>, %arg3: memref<4x1xf32, #tpu.memory_space<vmem>>, %arg4: memref<4x8x128xf32, #tpu.memory_space<vmem>>) attributes {dimension_semantics = [#tpu.dimension_semantics<parallel>], iteration_bounds = array<i64: 1>, scalar_prefetch = 0 : i64, scratch_operands = 0 : i64, tpu.core_type = #tpu.core_type<tc>, window_params = [{transform_indices = @transform_0, window_bounds = array<i64: 4, 8, 128>}, {pipeline_mode = #tpu.pipeline_mode<synchronous>, transform_indices = @transform_1, window_bounds = array<i64: 4, 4>}, {pipeline_mode = #tpu.pipeline_mode<synchronous>, transform_indices = @transform_2, window_bounds = array<i64: 4, 1>}, {transform_indices = @transform_3, window_bounds = array<i64: 4, 8, 128>}]} {
    %c0 = arith.constant 0 : index
    %c0_0 = arith.constant 0 : index
    %c0_1 = arith.constant 0 : index
    %0 = vector.load %arg1[%c0, %c0_0, %c0_1] : memref<4x8x128xf32, #tpu.memory_space<vmem>>, vector<4x8x128xf32>
    %cst = arith.constant dense<0.000000e+00> : vector<4x8xf32>
    %1 = vector.multi_reduction <add>, %0, %cst [2] : vector<4x8x128xf32> to vector<4x8xf32>
    %cst_2 = arith.constant 1.280000e+02 : f32
    %2 = vector.broadcast %cst_2 : f32 to vector<4x8xf32>
    %3 = arith.divf %1, %2 : vector<4x8xf32>
    %4 = vector.shape_cast %3 : vector<4x8xf32> to vector<4x8x1xf32>
    %5 = vector.broadcast %4 : vector<4x8x1xf32> to vector<4x8x128xf32>
    %6 = arith.subf %0, %5 : vector<4x8x128xf32>
    %7 = arith.mulf %6, %6 : vector<4x8x128xf32>
    %cst_3 = arith.constant dense<0.000000e+00> : vector<4x8xf32>
    %8 = vector.multi_reduction <add>, %7, %cst_3 [2] : vector<4x8x128xf32> to vector<4x8xf32>
    %cst_4 = arith.constant 0.00787401571 : f32
    %9 = vector.broadcast %cst_4 : f32 to vector<4x8xf32>
    %10 = arith.mulf %8, %9 : vector<4x8xf32>
    %cst_5 = arith.constant 9.99999997E-7 : f32
    %11 = vector.broadcast %cst_5 : f32 to vector<4x8xf32>
    %12 = arith.addf %10, %11 : vector<4x8xf32>
    %13 = math.sqrt %12 : vector<4x8xf32>
    %c0_6 = arith.constant 0 : index
    %c0_7 = arith.constant 0 : index
    %14 = vector.load %arg2[%c0_6, %c0_7] : memref<4x4xf32, #tpu.memory_space<vmem>>, vector<4x4xf32>
    %cst_8 = arith.constant dense<0.000000e+00> : vector<4x8xf32>
    %15 = tpu.matmul %14, %3, %cst_8 {dimension_numbers = #tpu.dot_dimension_numbers<[1], [0], [0], [1], [0, 0, 1, 1], [], []>} : vector<4x4xf32>, vector<4x8xf32>, vector<4x8xf32> -> vector<4x8xf32>
    %cst_9 = arith.constant dense<0.000000e+00> : vector<4x8xf32>
    %16 = tpu.matmul %14, %13, %cst_9 {dimension_numbers = #tpu.dot_dimension_numbers<[1], [0], [0], [1], [0, 0, 1, 1], [], []>} : vector<4x4xf32>, vector<4x8xf32>, vector<4x8xf32> -> vector<4x8xf32>
    %c0_10 = arith.constant 0 : index
    %c0_11 = arith.constant 0 : index
    %17 = vector.load %arg3[%c0_10, %c0_11] : memref<4x1xf32, #tpu.memory_space<vmem>>, vector<4x1xf32>
    %18 = vector.broadcast %17 : vector<4x1xf32> to vector<4x8xf32>
    %19 = arith.mulf %18, %3 : vector<4x8xf32>
    %cst_12 = arith.constant 1.000000e+00 : f32
    %20 = vector.broadcast %cst_12 : f32 to vector<4x1xf32>
    %21 = arith.subf %20, %17 : vector<4x1xf32>
    %22 = vector.broadcast %21 : vector<4x1xf32> to vector<4x8xf32>
    %23 = arith.mulf %22, %15 : vector<4x8xf32>
    %24 = arith.addf %19, %23 : vector<4x8xf32>
    %25 = vector.broadcast %17 : vector<4x1xf32> to vector<4x8xf32>
    %26 = arith.mulf %25, %13 : vector<4x8xf32>
    %cst_13 = arith.constant 1.000000e+00 : f32
    %27 = vector.broadcast %cst_13 : f32 to vector<4x1xf32>
    %28 = arith.subf %27, %17 : vector<4x1xf32>
    %29 = vector.broadcast %28 : vector<4x1xf32> to vector<4x8xf32>
    %30 = arith.mulf %29, %16 : vector<4x8xf32>
    %31 = arith.addf %26, %30 : vector<4x8xf32>
    %32 = arith.divf %31, %13 : vector<4x8xf32>
    %33 = arith.mulf %3, %32 : vector<4x8xf32>
    %34 = arith.subf %24, %33 : vector<4x8xf32>
    %35 = vector.shape_cast %32 : vector<4x8xf32> to vector<4x8x1xf32>
    %36 = vector.broadcast %35 : vector<4x8x1xf32> to vector<4x8x128xf32>
    %37 = arith.mulf %0, %36 : vector<4x8x128xf32>
    %38 = vector.shape_cast %34 : vector<4x8xf32> to vector<4x8x1xf32>
    %39 = vector.broadcast %38 : vector<4x8x1xf32> to vector<4x8x128xf32>
    %40 = arith.addf %37, %39 : vector<4x8x128xf32>
    %c0_14 = arith.constant 0 : index
    %c0_15 = arith.constant 0 : index
    %c0_16 = arith.constant 0 : index
    %41 = vector.load %arg4[%c0_14, %c0_15, %c0_16] : memref<4x8x128xf32, #tpu.memory_space<vmem>>, vector<4x8x128xf32>
    tpu.vector_store %arg4[%c0_14, %c0_15, %c0_16], %40 {strides = array<i32>} : memref<4x8x128xf32, #tpu.memory_space<vmem>>, vector<4x8x128xf32>,
    return
  }
  func.func @transform_0(%arg0: i32) -> (i32, i32, i32) {
    %c0_i32 = arith.constant 0 : i32
    %c0_i32_0 = arith.constant 0 : i32
    %c0_i32_1 = arith.constant 0 : i32
    return %c0_i32, %arg0, %c0_i32_0 : i32, i32, i32
  }
  func.func @transform_1(%arg0: i32) -> (i32, i32) {
    %c0_i32 = arith.constant 0 : i32
    %c0_i32_0 = arith.constant 0 : i32
    %c0_i32_1 = arith.constant 0 : i32
    return %c0_i32, %c0_i32_0 : i32, i32
  }
  func.func @transform_2(%arg0: i32) -> (i32, i32) {
    %c0_i32 = arith.constant 0 : i32
    %c0_i32_0 = arith.constant 0 : i32
    %c0_i32_1 = arith.constant 0 : i32
    return %c0_i32, %c0_i32_0 : i32, i32
  }
  func.func @transform_3(%arg0: i32) -> (i32, i32, i32) {
    %c0_i32 = arith.constant 0 : i32
    %c0_i32_0 = arith.constant 0 : i32
    %c0_i32_1 = arith.constant 0 : i32
    return %c0_i32, %arg0, %c0_i32_0 : i32, i32, i32
  }
}

</mosaic_0001>

<llo_original>
// kernel: tpu_custom_call.1
$region0: #{tpu_custom_call.1}
  #allocation0 [shape = 'u32[]', space=smem, size = 0x4, offset = 0x4, fixed_abs, tag = 'smem constant byte address 0x4 - core index']
  #allocation1 [shape = 'u32[72,128]{1,0:T(1,128)}', space=vmem, size = 0x9000, scoped, tag = 'internal scratch']
  %s0 = inlined_call_operand.hbm [shape: f32[4,8,128], index: 0, kind: input, shape index: {}]
  %s1 = inlined_call_operand.vmem [shape: f32[4,4], index: 1, kind: input, shape index: {}]
  %s2 = inlined_call_operand.vmem [shape: f32[4,1], index: 2, kind: input, shape index: {}]
  %s3 = inlined_call_operand.hbm [shape: f32[4,8,128], index: 3, kind: output, shape index: {}]
  %s4 = sld [smem:[#allocation0]]
  $region26: #{tpu_custom_call.1} parent=0
    _
  %s6 = ssub.s32 1, %s4
  %s7 = scalar_select 0, %s6, %s4
  $region1: #{tpu_custom_call.1} parent=0
    #allocation2 [shape = 'u8[16384]{0}', space=vmem, size = 0x4000, scoped, tag = 'input window, operand 0, single buffered']
    #allocation3 [shape = 's32[1]{0}', space=sflag, size = 0x4, scoped, tag = 'scoped memory for tpu_custom_call.1']
    #allocation4 [shape = 's32[1]{0}', space=sflag, size = 0x4, scoped, tag = 'scoped memory for tpu_custom_call.1']
    #allocation5 [shape = 'u8[16384]{0}', space=vmem, size = 0x4000, scoped, tag = 'output window, operand 0, single buffered']
    %8 = vsyncpa [#allocation3], 0
    %9 = vsyncpa [#allocation4], 0
    // Predicated region
    $region2: #{tpu_custom_call.1} parent=1 // pred_check
      _
    $region3: #{tpu_custom_call.1} parent=1 // pred_check_branch
      %11 = sbr.rel (0) target = $region5
    $region4: #{tpu_custom_call.1} parent=1 // pred_region
      %13 = vsyncadd [#allocation3], 0
      %s14 = sshll.u32 %s0, 4
      %s15 = int_to_ptr.hbm [resolvable:$true] %s14
      %s16 = sshll.u32 [#allocation2], 4
      %s17 = int_to_ptr.vmem [resolvable:$true] %s16
      %22 = dma.hbm_to_vmem [thread:$0]  %s15, 512, %s17, [#allocation3], 128, 128, 8
    $region5: #{tpu_custom_call.1} parent=1 // pred_fallthru
      _
    // Predicated region
    $region6: #{tpu_custom_call.1} parent=1 // pred_check
      _
    $region7: #{tpu_custom_call.1} parent=1 // pred_check_branch
      %24 = sbr.rel (0) target = $region9
    $region8: #{tpu_custom_call.1} parent=1 // pred_region
      _
    $region9: #{tpu_custom_call.1} parent=1 // pred_fallthru
      _
    // Predicated region
    $region10: #{tpu_custom_call.1} parent=1 // pred_check
      _
    $region11: #{tpu_custom_call.1} parent=1 // pred_check_branch
      %26 = sbr.rel (0) target = $region13
    $region12: #{tpu_custom_call.1} parent=1 // pred_region
      _
    $region13: #{tpu_custom_call.1} parent=1 // pred_fallthru
      _
    // Predicated region
    $region14: #{tpu_custom_call.1} parent=1 // pred_check
      _
    $region15: #{tpu_custom_call.1} parent=1 // pred_check_branch
      %28 = sbr.rel (0) target = $region17
    $region16: #{tpu_custom_call.1} parent=1 // pred_region
      %30 = dma.done [#allocation3], 512
    $region17: #{tpu_custom_call.1} parent=1 // pred_fallthru
      _
    %v31 = vld [vmem:[#allocation2] sm:$0xff]
    %v32 = vld [vmem:[#allocation2 + $0x8] sm:$0xff]
    %v33 = vld [vmem:[#allocation2 + $0x10] sm:$0xff]
    %v34 = vld [vmem:[#allocation2 + $0x18] sm:$0xff]
    %35 = vadd.xlane.f32.xlu0 %v31
    %v36 = vpop.xlane.xlu0 %35
    %37 = vadd.xlane.f32.xlu0 %v32
    %v38 = vpop.xlane.xlu0 %37
    %39 = vadd.xlane.f32.xlu0 %v33
    %v40 = vpop.xlane.xlu0 %39
    %41 = vadd.xlane.f32.xlu0 %v34
    %v42 = vpop.xlane.xlu0 %41
    %v43 = vrcp.pop 128.0
    %v44 = vmul.f32 128.0, %v43
    %v45 = vsub.f32 1.0, %v44
    %v46 = vmul.f32 %v43, %v45
    %v47 = vadd.f32 %v43, %v46
    %vm48 = vweird.f32 %v43
    %v49 = vsel %vm48, %v43, %v47
    %v50 = vmul.f32 %v36, %v49
    %v51 = vmul.f32 %v38, %v49
    %v52 = vmul.f32 %v40, %v49
    %v53 = vmul.f32 %v42, %v49
    %v54 = vsub.f32 %v31, %v50
    %v55 = vsub.f32 %v32, %v51
    %v56 = vsub.f32 %v33, %v52
    %v57 = vsub.f32 %v34, %v53
    %v58 = vmul.f32 %v54, %v54
    %v59 = vmul.f32 %v55, %v55
    %v60 = vmul.f32 %v56, %v56
    %v61 = vmul.f32 %v57, %v57
    %62 = vadd.xlane.f32.xlu0 %v58
    %v63 = vpop.xlane.xlu0 %62
    %64 = vadd.xlane.f32.xlu0 %v59
    %v65 = vpop.xlane.xlu0 %64
    %66 = vadd.xlane.f32.xlu0 %v60
    %v67 = vpop.xlane.xlu0 %66
    %68 = vadd.xlane.f32.xlu0 %v61
    %v69 = vpop.xlane.xlu0 %68
    %v70 = vmul.f32 %v63, 0.007874016
    %v71 = vmul.f32 %v65, 0.007874016
    %v72 = vmul.f32 %v67, 0.007874016
    %v73 = vmul.f32 %v69, 0.007874016
    %v74 = vadd.f32 %v70, 1e-06
    %v75 = vadd.f32 %v71, 1e-06
    %v76 = vadd.f32 %v72, 1e-06
    %v77 = vadd.f32 %v73, 1e-06
    %v78 = vrsqrt.pop %v74
    %v79 = vmul.f32 %v78, %v74
    %v80 = vmul.f32 %v79, %v78
    %v81 = vmul.f32 0.5, %v80
    %v82 = vsub.f32 1.5, %v81
    %v83 = vmul.f32 %v78, %v82
    %v84 = vmul.f32 %v74, %v83
    %vm85 = vcmp.eq.f32.partialorder %v74, inf
    %v86 = vsel %vm85, %v74, %v84
    %vm87 = vcmp.eq.f32.partialorder %v74, 0.0
    %v88 = vand.u32 %v74, 2147483648
    %v89 = vsel %vm87, %v88, %v86
    %v90 = vrsqrt.pop %v75
    %v91 = vmul.f32 %v90, %v75
    %v92 = vmul.f32 %v91, %v90
    %v93 = vmul.f32 0.5, %v92
    %v94 = vsub.f32 1.5, %v93
    %v95 = vmul.f32 %v90, %v94
    %v96 = vmul.f32 %v75, %v95
    %vm97 = vcmp.eq.f32.partialorder %v75, inf
    %v98 = vsel %vm97, %v75, %v96
    %vm99 = vcmp.eq.f32.partialorder %v75, 0.0
    %v100 = vand.u32 %v75, 2147483648
    %v101 = vsel %vm99, %v100, %v98
    %v102 = vrsqrt.pop %v76
    %v103 = vmul.f32 %v102, %v76
    %v104 = vmul.f32 %v103, %v102
    %v105 = vmul.f32 0.5, %v104
    %v106 = vsub.f32 1.5, %v105
    %v107 = vmul.f32 %v102, %v106
    %v108 = vmul.f32 %v76, %v107
    %vm109 = vcmp.eq.f32.partialorder %v76, inf
    %v110 = vsel %vm109, %v76, %v108
    %vm111 = vcmp.eq.f32.partialorder %v76, 0.0
    %v112 = vand.u32 %v76, 2147483648
    %v113 = vsel %vm111, %v112, %v110
    %v114 = vrsqrt.pop %v77
    %v115 = vmul.f32 %v114, %v77
    %v116 = vmul.f32 %v115, %v114
    %v117 = vmul.f32 0.5, %v116
    %v118 = vsub.f32 1.5, %v117
    %v119 = vmul.f32 %v114, %v118
    %v120 = vmul.f32 %v77, %v119
    %vm121 = vcmp.eq.f32.partialorder %v77, inf
    %v122 = vsel %vm121, %v77, %v120
    %vm123 = vcmp.eq.f32.partialorder %v77, 0.0
    %v124 = vand.u32 %v77, 2147483648
    %v125 = vsel %vm123, %v124, %v122
    %v126 = vld [vmem:[%s1] sm:$0xf]
    %v131 = vlaneseq
    %v132 = vand.u32 %v131, 127
    %v133 = vperm.slane %v50, %v132
    %v134 = vperm.slane %v51, %v132
    %v135 = vperm.slane %v52, %v132
    %v136 = vperm.slane %v53, %v132
    %vm137 = vcmask 1041409
    %v138 = vsel %vm137, %v134, %v133
    %vm139 = vcmask 1042434
    %v140 = vsel %vm139, %v135, %v138
    %vm141 = vcmask 1043459
    %v142 = vsel %vm141, %v136, %v140
    %vm143 = vcmask 31744
    %v145 = vsel %vm143, %v126, 0
    %vm147 = vcmask 1043456
    %v148 = vsel %vm147, %v142, 0
    %150 = vmatpush.msra.mxu0 0.0
    %151 = vmatpush.msra.mxu0 0.0
    %152 = vmatpush.msra.mxu0 0.0
    %153 = vmatpush.msra.mxu0 0.0
    %154 = vmatpush.msra.mxu0 0.0
    %155 = vmatpush.msra.mxu0 0.0
    %156 = vmatpush.msra.mxu0 0.0
    %157 = vmatpush.msra.mxu0 0.0
    %158 = vmatpush.msra.mxu0 0.0
    %159 = vmatpush.msra.mxu0 0.0
    %160 = vmatpush.msra.mxu0 0.0
    %161 = vmatpush.msra.mxu0 0.0
    %162 = vmatpush.msra.mxu0 0.0
    %163 = vmatpush.msra.mxu0 0.0
    %164 = vmatpush.msra.mxu0 0.0
    %165 = vmatpush.msra.mxu0 %v148
    %166 = vmatmul.f32.gmra.mxu0 %v145
    %v167 = vpop.f32.mrf.mxu0
    %v168 = vadd.f32 0.0, %v167
    %169 = vdwg.mxu0
    %v174 = vperm.slane %v89, %v132
    %v175 = vperm.slane %v101, %v132
    %v176 = vperm.slane %v113, %v132
    %v177 = vperm.slane %v125, %v132
    %v178 = vsel %vm137, %v175, %v174
    %v179 = vsel %vm139, %v176, %v178
    %v180 = vsel %vm141, %v177, %v179
    %v181 = vsel %vm147, %v180, 0
    %183 = vmatpush.msra.mxu0 0.0
    %184 = vmatpush.msra.mxu0 0.0
    %185 = vmatpush.msra.mxu0 0.0
    %186 = vmatpush.msra.mxu0 0.0
    %187 = vmatpush.msra.mxu0 0.0
    %188 = vmatpush.msra.mxu0 0.0
    %189 = vmatpush.msra.mxu0 0.0
    %190 = vmatpush.msra.mxu0 0.0
    %191 = vmatpush.msra.mxu0 0.0
    %192 = vmatpush.msra.mxu0 0.0
    %193 = vmatpush.msra.mxu0 0.0
    %194 = vmatpush.msra.mxu0 0.0
    %195 = vmatpush.msra.mxu0 0.0
    %196 = vmatpush.msra.mxu0 0.0
    %197 = vmatpush.msra.mxu0 0.0
    %198 = vmatpush.msra.mxu0 %v181
    %199 = vmatmul.f32.gmra.mxu0 %v145
    %v200 = vpop.f32.mrf.mxu0
    %v201 = vadd.f32 0.0, %v200
    %202 = vdwg.mxu0
    %v203 = vld [vmem:[%s2] sm:$0xf]
    %205 = vset.pattern.permute.xlu0 0
    %206 = vperm.xlu0 %205, %v203
    %v207 = vpop.permute.xlu0 %206
    %v210 = vmul.f32 %v207, %v142
    %v211 = vsub.f32 1.0, %v203
    %213 = vset.pattern.permute.xlu0 0
    %214 = vperm.xlu0 %213, %v211
    %v215 = vpop.permute.xlu0 %214
    %v217 = vmul.f32 %v215, %v168
    %v218 = vadd.f32 %v210, %v217
    %v220 = vmul.f32 %v207, %v180
    %v221 = vmul.f32 %v215, %v201
    %v222 = vadd.f32 %v220, %v221
    %v223 = vrcp.pop %v180
    %v224 = vmul.f32 %v180, %v223
    %v225 = vsub.f32 1.0, %v224
    %v226 = vmul.f32 %v223, %v225
    %v227 = vadd.f32 %v223, %v226
    %vm228 = vweird.f32 %v180
    %vm229 = vweird.f32 %v223
    %vm230 = vmor %vm228, %vm229
    %v231 = vsel %vm230, %v223, %v227
    %v232 = vand.u32 2147483647, %v180
    %vm233 = vcmp.eq.f32.partialorder %v232, 8.507059e+37
    %v234 = vand.u32 %v180, 2147483648
    %v235 = vor.u32 1.1754944e-38, %v234
    %v236 = vsel %vm233, %v235, %v231
    %v237 = vmul.f32 %v222, %v236
    %v239 = vperm.slane %v237, 0
    %v240 = vlaneseq
    %v241 = vshrl.u32 %v240, 7
    %243 = vset.pattern.permute.xlu0 %v241
    %244 = vperm.xlu0 %243, %v239
    %v245 = vpop.permute.xlu0 %244
    %v246 = vperm.slane %v237, 1
    %v247 = vlaneseq
    %v248 = vshrl.u32 %v247, 7
    %250 = vset.pattern.permute.xlu0 %v248
    %251 = vperm.xlu0 %250, %v246
    %v252 = vpop.permute.xlu0 %251
    %v253 = vperm.slane %v237, 2
    %v254 = vlaneseq
    %v255 = vshrl.u32 %v254, 7
    %257 = vset.pattern.permute.xlu0 %v255
    %258 = vperm.xlu0 %257, %v253
    %v259 = vpop.permute.xlu0 %258
    %v260 = vperm.slane %v237, 3
    %v261 = vlaneseq
    %v262 = vshrl.u32 %v261, 7
    %264 = vset.pattern.permute.xlu0 %v262
    %265 = vperm.xlu0 %264, %v260
    %v266 = vpop.permute.xlu0 %265
    %v271 = vmul.f32 %v50, %v245
    %v272 = vmul.f32 %v51, %v252
    %v273 = vmul.f32 %v52, %v259
    %v274 = vmul.f32 %v53, %v266
    %279 = vset.pattern.permute.xlu0 0
    %280 = vperm.xlu0 %279, %v271
    %v281 = vpop.permute.xlu0 %280
    %282 = vset.pattern.permute.xlu0 0
    %283 = vperm.xlu0 %282, %v272
    %v284 = vpop.permute.xlu0 %283
    %285 = vset.pattern.permute.xlu0 0
    %286 = vperm.xlu0 %285, %v273
    %v287 = vpop.permute.xlu0 %286
    %288 = vset.pattern.permute.xlu0 0
    %289 = vperm.xlu0 %288, %v274
    %v290 = vpop.permute.xlu0 %289
    %v291 = vperm.slane %v281, %v132
    %v292 = vperm.slane %v284, %v132
    %v293 = vperm.slane %v287, %v132
    %v294 = vperm.slane %v290, %v132
    %v295 = vsel %vm137, %v292, %v291
    %v296 = vsel %vm139, %v293, %v295
    %v297 = vsel %vm141, %v294, %v296
    %v299 = vsub.f32 %v218, %v297
    %v300 = vperm.slane %v237, 0
    %v301 = vlaneseq
    %v302 = vshrl.u32 %v301, 7
    %304 = vset.pattern.permute.xlu0 %v302
    %305 = vperm.xlu0 %304, %v300
    %v306 = vpop.permute.xlu0 %305
    %v307 = vperm.slane %v237, 1
    %v308 = vlaneseq
    %v309 = vshrl.u32 %v308, 7
    %311 = vset.pattern.permute.xlu0 %v309
    %312 = vperm.xlu0 %311, %v307
    %v313 = vpop.permute.xlu0 %312
    %v314 = vperm.slane %v237, 2
    %v315 = vlaneseq
    %v316 = vshrl.u32 %v315, 7
    %318 = vset.pattern.permute.xlu0 %v316
    %319 = vperm.xlu0 %318, %v314
    %v320 = vpop.permute.xlu0 %319
    %v321 = vperm.slane %v237, 3
    %v322 = vlaneseq
    %v323 = vshrl.u32 %v322, 7
    %325 = vset.pattern.permute.xlu0 %v323
    %326 = vperm.xlu0 %325, %v321
    %v327 = vpop.permute.xlu0 %326
    %v328 = vmul.f32 %v31, %v306
    %v329 = vmul.f32 %v32, %v313
    %v330 = vmul.f32 %v33, %v320
    %v331 = vmul.f32 %v34, %v327
    %v332 = vperm.slane %v299, 0
    %v333 = vlaneseq
    %v334 = vshrl.u32 %v333, 7
    %336 = vset.pattern.permute.xlu0 %v334
    %337 = vperm.xlu0 %336, %v332
    %v338 = vpop.permute.xlu0 %337
    %v339 = vperm.slane %v299, 1
    %v340 = vlaneseq
    %v341 = vshrl.u32 %v340, 7
    %343 = vset.pattern.permute.xlu0 %v341
    %344 = vperm.xlu0 %343, %v339
    %v345 = vpop.permute.xlu0 %344
    %v346 = vperm.slane %v299, 2
    %v347 = vlaneseq
    %v348 = vshrl.u32 %v347, 7
    %350 = vset.pattern.permute.xlu0 %v348
    %351 = vperm.xlu0 %350, %v346
    %v352 = vpop.permute.xlu0 %351
    %v353 = vperm.slane %v299, 3
    %v354 = vlaneseq
    %v355 = vshrl.u32 %v354, 7
    %357 = vset.pattern.permute.xlu0 %v355
    %358 = vperm.xlu0 %357, %v353
    %v359 = vpop.permute.xlu0 %358
    %v360 = vadd.f32 %v328, %v338
    %v361 = vadd.f32 %v329, %v345
    %v362 = vadd.f32 %v330, %v352
    %v363 = vadd.f32 %v331, %v359
    %364 = vst [vmem:[#allocation5] sm:$0xff] %v360
    %365 = vst [vmem:[#allocation5 + $0x8] sm:$0xff] %v361
    %366 = vst [vmem:[#allocation5 + $0x10] sm:$0xff] %v362
    %367 = vst [vmem:[#allocation5 + $0x18] sm:$0xff] %v363
    // Predicated region
    $region18: #{tpu_custom_call.1} parent=1 // pred_check
      _
    $region19: #{tpu_custom_call.1} parent=1 // pred_check_branch
      %369 = sbr.rel (0) target = $region21
    $region20: #{tpu_custom_call.1} parent=1 // pred_region
      %371 = vsyncadd [#allocation4], 0
      %s372 = sshll.u32 [#allocation5], 4
      %s373 = int_to_ptr.vmem [resolvable:$true] %s372
      %s374 = sshll.u32 %s3, 4
      %s375 = int_to_ptr.hbm [resolvable:$true] %s374
      %380 = dma.vmem_to_hbm [thread:$0]  %s373, 512, %s375, [#allocation4], 128, 128, 8
    $region21: #{tpu_custom_call.1} parent=1 // pred_fallthru
      _
    // Predicated region
    $region22: #{tpu_custom_call.1} parent=1 // pred_check
      _
    $region23: #{tpu_custom_call.1} parent=1 // pred_check_branch
      %382 = sbr.rel (0) target = $region25
    $region24: #{tpu_custom_call.1} parent=1 // pred_region
      %384 = dma.done [#allocation4], 512
    $region25: #{tpu_custom_call.1} parent=1 // pred_fallthru
      _
    %385 = vsyncpa [#allocation3], 1
    %386 = vsyncpa [#allocation4], 1

</llo_original>
